<compile_context>
chip_gen: v7x
topology: tpu7x:2x2x1
jax: 0.10.0
libtpu: 0.0.40
codegen_flags: <defaults>
</compile_context>

<pallas_src>
import jax
import jax.numpy as jnp
from jax.experimental import pallas as pl
from jax.experimental.pallas import tpu as pltpu


def _round_up(x, m):
    return ((x + m - 1) // m) * m


def emotion_head_kernel(labels_ref, x_ref, emb_ref,
                        w1x_ref, w1c_ref, b1_ref, w2_ref, b2_ref,
                        out_ref):
    labels = labels_ref[...]                              # (TB, S) int32
    TB, S = labels.shape
    V = emb_ref.shape[0]                                  # num_chord_labels + 1

    # --- chord_embedding(labels).mean(dim=1) via label-count matmul ---
    #   mean_s E[labels[b, s], :] == counts[b, :] @ (E / S)   (1/S pre-folded)
    # S is a small static constant -> fully unrolled; peak live data is one
    # (TB, V) slab instead of a lane-padded (TB, S, V) one-hot.  Compare loop
    # stays f32 (VPU); counts are small exact integers, so the bf16 cast for
    # the MXU is lossless.
    iota_v = jax.lax.broadcasted_iota(jnp.int32, (TB, V), 1)   # hoisted
    counts = jnp.zeros((TB, V), jnp.float32)
    for s in range(S):
        counts = counts + (labels[:, s:s + 1] == iota_v).astype(jnp.float32)

    chord_mean = jnp.dot(counts.astype(jnp.bfloat16), emb_ref[...],
                         preferred_element_type=jnp.float32)   # (TB, 64) f32

    # --- fc1: [cls|additional|pad] @ W1x + chord_mean @ W1c + b1 ---
    # (weights already [in, out]; equivalent to the single concatenated fc1)
    hidden = (jnp.dot(x_ref[...], w1x_ref[...],
                      preferred_element_type=jnp.float32)
              + jnp.dot(chord_mean.astype(jnp.bfloat16), w1c_ref[...],
                        preferred_element_type=jnp.float32)
              + b1_ref[...])                              # (TB, H) f32

    # --- fc2 (output lane-padded to 128; sliced in the wrapper) ---
    out_ref[...] = (jnp.dot(hidden.astype(jnp.bfloat16), w2_ref[...],
                            preferred_element_type=jnp.float32)
                    + b2_ref[...])                        # (TB, 128) f32


def emotion_head(chord_labels, cls_hidden, additional_features, params,
                 *, block_b=512):
    """Pallas wrapper: 1-D grid over batch, weights resident across steps."""
    B, S = chord_labels.shape
    labels = chord_labels.astype(jnp.int32)

    V, E = params["emb"].shape                            # vocab, 64
    H = params["w1x"].shape[1]                            # hidden_dim
    O = params["w2"].shape[1]                             # true output_dim (2)

    # ---- prepare dense features: concat once, pad K to a multiple of 128 ----
    x = jnp.concatenate([cls_hidden, additional_features],
                        axis=1).astype(jnp.float32)
    D = x.shape[1]
    Dp = _round_up(D, 128)
    if Dp != D:
        x = jnp.pad(x, ((0, 0), (0, Dp - D)))
    x = x.astype(jnp.bfloat16)                            # MXU operand

    # ---- prepare MXU-side params: bf16, K-padded w1x, lane-dense output ----
    OP = _round_up(max(O, 128), 128)                      # pad out to 128 lanes
    emb = (params["emb"] * (1.0 / S)).astype(jnp.bfloat16)   # fold 1/S here
    w1x = params["w1x"].astype(jnp.bfloat16)
    if Dp != D:
        w1x = jnp.pad(w1x, ((0, Dp - D), (0, 0)))         # zero rows for pad K
    w1c = params["w1c"].astype(jnp.bfloat16)
    b1 = params["b1"].astype(jnp.float32)
    w2 = jnp.pad(params["w2"], ((0, 0), (0, OP - O))).astype(jnp.bfloat16)
    b2 = jnp.pad(params["b2"], ((0, 0), (0, OP - O))).astype(jnp.float32)

    # ---- batch tile: sublane-aligned, >=2 grid steps when B permits (v7x) ----
    if B <= 8:
        tb = B
    else:
        tb = min(block_b, _round_up(pl.cdiv(B, 2), 8))
    grid = (pl.cdiv(B, tb),)

    def rows(i):      # batch-tiled operands
        return (i, 0)

    def const(i):     # weights / biases: same block every step -> no re-DMA
        return (0, 0)

    # ---- VMEM budget: streamed tiles double-buffered + resident weights ----
    stream_bytes = tb * S * 4 + tb * Dp * 2 + tb * OP * 4
    weight_bytes = (V * E * 2 + Dp * H * 2 + E * H * 2 + H * OP * 2
                    + H * 4 + OP * 4)
    vmem_limit = int(min(max(4 * stream_bytes + 2 * weight_bytes + (2 << 20),
                             8 << 20),
                         32 << 20))

    cost = pl.CostEstimate(
        flops=2 * B * (Dp * H + E * H + H * OP + S * V + V * E),
        transcendentals=0,
        bytes_accessed=(B * S * 4 + B * Dp * 2 + B * OP * 4 + weight_bytes),
    )

    out = pl.pallas_call(
        emotion_head_kernel,
        out_shape=jax.ShapeDtypeStruct((B, OP), jnp.float32),
        grid=grid,
        in_specs=[
            pl.BlockSpec((tb, S), rows),    # chord labels (int32)
            pl.BlockSpec((tb, Dp), rows),   # [CLS | additional | 0-pad], bf16
            pl.BlockSpec((V, E), const),    # embedding table (1/S folded), bf16
            pl.BlockSpec((Dp, H), const),   # fc1 weights (text part), [in,out]
            pl.BlockSpec((E, H), const),    # fc1 weights (chord part), [in,out]
            pl.BlockSpec((1, H), const),    # fc1 bias, f32
            pl.BlockSpec((H, OP), const),   # fc2 weights (O padded to 128)
            pl.BlockSpec((1, OP), const),   # fc2 bias (O padded to 128), f32
        ],
        out_specs=pl.BlockSpec((tb, OP), rows),
        compiler_params=pltpu.CompilerParams(
            dimension_semantics=("parallel",),
            vmem_limit_bytes=vmem_limit,
        ),
        cost_estimate=cost,
    )(labels, x, emb, w1x, w1c, b1, w2, b2)

    return out[:, :O]                                     # drop lane padding


def reference(chord_labels, cls_hidden, additional_features, params):
    """Plain-JAX f32 mirror of the PyTorch forward (correctness check)."""
    emb = params["emb"][chord_labels]                     # (B, S, 64) gather
    chord_mean = emb.mean(axis=1)                         # (B, 64)
    concat = jnp.concatenate([cls_hidden, additional_features, chord_mean],
                             axis=1)
    w1 = jnp.concatenate([params["w1x"], params["w1c"]], axis=0)  # (K, H)
    hidden = concat @ w1 + params["b1"]
    return hidden @ params["w2"] + params["b2"]


def init_params(key, bert_hidden, additional_dim, chord_emb_dim,
                num_chord_labels, hidden_dim, output_dim):
    ks = jax.random.split(key, 5)
    scale = 0.05
    emb = scale * jax.random.normal(
        ks[0], (num_chord_labels + 1, chord_emb_dim), jnp.float32)
    # padding_idx = num_chord_labels -> zero row (PyTorch nn.Embedding behavior)
    emb = emb.at[num_chord_labels].set(0.0)
    d_text = bert_hidden + additional_dim
    w1 = scale * jax.random.normal(
        ks[1], (hidden_dim, d_text + chord_emb_dim), jnp.float32)
    w2 = scale * jax.random.normal(
        ks[2], (output_dim, hidden_dim), jnp.float32)
    return {
        "emb": emb,
        # fc weights stored pre-transposed to [in_features, out_features] so
        # the kernel never transposes on the XLU.
        "w1x": jnp.transpose(w1[:, :d_text]),             # (d_text, hidden)
        "w1c": jnp.transpose(w1[:, d_text:]),             # (64, hidden)
        "b1": scale * jax.random.normal(ks[3], (1, hidden_dim), jnp.float32),
        "w2": jnp.transpose(w2),                          # (hidden, out)
        "b2": scale * jax.random.normal(ks[4], (1, output_dim), jnp.float32),
    }


if __name__ == "__main__":
    # Small, module-consistent shapes (hidden_dim=256, output_dim=2 per spec;
    # BERT hidden kept small as a stand-in for 768).
    B = 2                       # batch
    S = 8                       # chord sequence length
    BERT_H = 32                 # stand-in for bert.config.hidden_size (768)
    ADD_DIM = 8                 # additional_features_dim
    CHORD_EMB = 64              # hard-coded 64 in the module
    NUM_CHORDS = 12             # num_chord_labels (+1 padding row)
    HIDDEN = 256                # hidden_dim (matches module, MXU-aligned)
    OUT = 2                     # output_dim

    key = jax.random.PRNGKey(0)
    k_in, k_par = jax.random.split(key)
    k1, k2, k3 = jax.random.split(k_in, 3)

    cls_hidden = jax.random.normal(k1, (B, BERT_H), jnp.float32)
    additional = jax.random.normal(k2, (B, ADD_DIM), jnp.float32)
    chord_labels = jax.random.randint(k3, (B, S), 0, NUM_CHORDS + 1,
                                      dtype=jnp.int32)  # may include pad idx

    params = init_params(k_par, BERT_H, ADD_DIM, CHORD_EMB,
                         NUM_CHORDS, HIDDEN, OUT)

    out = emotion_head(chord_labels, cls_hidden, additional, params)
    out = jax.block_until_ready(out)

    ref = reference(chord_labels, cls_hidden, additional, params)
    assert out.shape == (B, OUT)
    # bf16 MXU operands -> relaxed tolerance vs. the f32 reference.
    assert jnp.allclose(out, ref, atol=5e-2, rtol=5e-2), (out, ref)

    print("KERNEL_OK")
</pallas_src>

<mosaic_0001>
module attributes {stable_mosaic.version = 11 : i64} {
  func.func @emotion_head_kernel(%arg0: i32, %arg1: memref<2x8xi32, #tpu.memory_space<vmem>>, %arg2: memref<2x128xbf16, #tpu.memory_space<vmem>>, %arg3: memref<13x64xbf16, #tpu.memory_space<vmem>>, %arg4: memref<128x256xbf16, #tpu.memory_space<vmem>>, %arg5: memref<64x256xbf16, #tpu.memory_space<vmem>>, %arg6: memref<1x256xf32, #tpu.memory_space<vmem>>, %arg7: memref<256x128xbf16, #tpu.memory_space<vmem>>, %arg8: memref<1x128xf32, #tpu.memory_space<vmem>>, %arg9: memref<2x128xf32, #tpu.memory_space<vmem>>) attributes {dimension_semantics = [#tpu.dimension_semantics<parallel>], iteration_bounds = array<i64: 1>, scalar_prefetch = 0 : i64, scratch_operands = 0 : i64, tpu.core_type = #tpu.core_type<tc>, window_params = [{transform_indices = @transform_0, window_bounds = array<i64: 2, 8>}, {transform_indices = @transform_1, window_bounds = array<i64: 2, 128>}, {pipeline_mode = #tpu.pipeline_mode<synchronous>, transform_indices = @transform_2, window_bounds = array<i64: 13, 64>}, {pipeline_mode = #tpu.pipeline_mode<synchronous>, transform_indices = @transform_3, window_bounds = array<i64: 128, 256>}, {pipeline_mode = #tpu.pipeline_mode<synchronous>, transform_indices = @transform_4, window_bounds = array<i64: 64, 256>}, {pipeline_mode = #tpu.pipeline_mode<synchronous>, transform_indices = @transform_5, window_bounds = array<i64: 1, 256>}, {pipeline_mode = #tpu.pipeline_mode<synchronous>, transform_indices = @transform_6, window_bounds = array<i64: 256, 128>}, {pipeline_mode = #tpu.pipeline_mode<synchronous>, transform_indices = @transform_7, window_bounds = array<i64: 1, 128>}, {transform_indices = @transform_8, window_bounds = array<i64: 2, 128>}]} {
    %c0 = arith.constant 0 : index
    %c0_0 = arith.constant 0 : index
    %0 = vector.load %arg1[%c0, %c0_0] : memref<2x8xi32, #tpu.memory_space<vmem>>, vector<2x8xi32>
    %1 = tpu.iota {dimensions = array<i32: 1>} : vector<2x13xi32>
    %cst = arith.constant 0.000000e+00 : f32
    %2 = vector.broadcast %cst : f32 to vector<2x13xf32>
    %3 = vector.extract_strided_slice %0 {offsets = [0, 0], sizes = [2, 1], strides = [1, 1]} : vector<2x8xi32> to vector<2x1xi32>
    %4 = vector.broadcast %3 : vector<2x1xi32> to vector<2x13xi32>
    %5 = arith.cmpi eq, %4, %1 : vector<2x13xi32>
    %6 = arith.extui %5 : vector<2x13xi1> to vector<2x13xi32>
    %7 = arith.sitofp %6 : vector<2x13xi32> to vector<2x13xf32>
    %8 = arith.addf %2, %7 : vector<2x13xf32>
    %9 = vector.extract_strided_slice %0 {offsets = [0, 1], sizes = [2, 1], strides = [1, 1]} : vector<2x8xi32> to vector<2x1xi32>
    %10 = vector.broadcast %9 : vector<2x1xi32> to vector<2x13xi32>
    %11 = arith.cmpi eq, %10, %1 : vector<2x13xi32>
    %12 = arith.extui %11 : vector<2x13xi1> to vector<2x13xi32>
    %13 = arith.sitofp %12 : vector<2x13xi32> to vector<2x13xf32>
    %14 = arith.addf %8, %13 : vector<2x13xf32>
    %15 = vector.extract_strided_slice %0 {offsets = [0, 2], sizes = [2, 1], strides = [1, 1]} : vector<2x8xi32> to vector<2x1xi32>
    %16 = vector.broadcast %15 : vector<2x1xi32> to vector<2x13xi32>
    %17 = arith.cmpi eq, %16, %1 : vector<2x13xi32>
    %18 = arith.extui %17 : vector<2x13xi1> to vector<2x13xi32>
    %19 = arith.sitofp %18 : vector<2x13xi32> to vector<2x13xf32>
    %20 = arith.addf %14, %19 : vector<2x13xf32>
    %21 = vector.extract_strided_slice %0 {offsets = [0, 3], sizes = [2, 1], strides = [1, 1]} : vector<2x8xi32> to vector<2x1xi32>
    %22 = vector.broadcast %21 : vector<2x1xi32> to vector<2x13xi32>
    %23 = arith.cmpi eq, %22, %1 : vector<2x13xi32>
    %24 = arith.extui %23 : vector<2x13xi1> to vector<2x13xi32>
    %25 = arith.sitofp %24 : vector<2x13xi32> to vector<2x13xf32>
    %26 = arith.addf %20, %25 : vector<2x13xf32>
    %27 = vector.extract_strided_slice %0 {offsets = [0, 4], sizes = [2, 1], strides = [1, 1]} : vector<2x8xi32> to vector<2x1xi32>
    %28 = vector.broadcast %27 : vector<2x1xi32> to vector<2x13xi32>
    %29 = arith.cmpi eq, %28, %1 : vector<2x13xi32>
    %30 = arith.extui %29 : vector<2x13xi1> to vector<2x13xi32>
    %31 = arith.sitofp %30 : vector<2x13xi32> to vector<2x13xf32>
    %32 = arith.addf %26, %31 : vector<2x13xf32>
    %33 = vector.extract_strided_slice %0 {offsets = [0, 5], sizes = [2, 1], strides = [1, 1]} : vector<2x8xi32> to vector<2x1xi32>
    %34 = vector.broadcast %33 : vector<2x1xi32> to vector<2x13xi32>
    %35 = arith.cmpi eq, %34, %1 : vector<2x13xi32>
    %36 = arith.extui %35 : vector<2x13xi1> to vector<2x13xi32>
    %37 = arith.sitofp %36 : vector<2x13xi32> to vector<2x13xf32>
    %38 = arith.addf %32, %37 : vector<2x13xf32>
    %39 = vector.extract_strided_slice %0 {offsets = [0, 6], sizes = [2, 1], strides = [1, 1]} : vector<2x8xi32> to vector<2x1xi32>
    %40 = vector.broadcast %39 : vector<2x1xi32> to vector<2x13xi32>
    %41 = arith.cmpi eq, %40, %1 : vector<2x13xi32>
    %42 = arith.extui %41 : vector<2x13xi1> to vector<2x13xi32>
    %43 = arith.sitofp %42 : vector<2x13xi32> to vector<2x13xf32>
    %44 = arith.addf %38, %43 : vector<2x13xf32>
    %45 = vector.extract_strided_slice %0 {offsets = [0, 7], sizes = [2, 1], strides = [1, 1]} : vector<2x8xi32> to vector<2x1xi32>
    %46 = vector.broadcast %45 : vector<2x1xi32> to vector<2x13xi32>
    %47 = arith.cmpi eq, %46, %1 : vector<2x13xi32>
    %48 = arith.extui %47 : vector<2x13xi1> to vector<2x13xi32>
    %49 = arith.sitofp %48 : vector<2x13xi32> to vector<2x13xf32>
    %50 = arith.addf %44, %49 : vector<2x13xf32>
    %51 = arith.truncf %50 : vector<2x13xf32> to vector<2x13xbf16>
    %c0_1 = arith.constant 0 : index
    %c0_2 = arith.constant 0 : index
    %52 = vector.load %arg3[%c0_1, %c0_2] : memref<13x64xbf16, #tpu.memory_space<vmem>>, vector<13x64xbf16>
    %cst_3 = arith.constant dense<0.000000e+00> : vector<2x64xf32>
    %53 = tpu.matmul %51, %52, %cst_3 {dimension_numbers = #tpu.dot_dimension_numbers<[1], [0], [0], [1], [0, 0, 1, 1], [], []>} : vector<2x13xbf16>, vector<13x64xbf16>, vector<2x64xf32> -> vector<2x64xf32>
    %c0_4 = arith.constant 0 : index
    %c0_5 = arith.constant 0 : index
    %54 = vector.load %arg2[%c0_4, %c0_5] : memref<2x128xbf16, #tpu.memory_space<vmem>>, vector<2x128xbf16>
    %c0_6 = arith.constant 0 : index
    %c0_7 = arith.constant 0 : index
    %55 = vector.load %arg4[%c0_6, %c0_7] : memref<128x256xbf16, #tpu.memory_space<vmem>>, vector<128x256xbf16>
    %cst_8 = arith.constant dense<0.000000e+00> : vector<2x256xf32>
    %56 = tpu.matmul %54, %55, %cst_8 {dimension_numbers = #tpu.dot_dimension_numbers<[1], [0], [0], [1], [0, 0, 1, 1], [], []>} : vector<2x128xbf16>, vector<128x256xbf16>, vector<2x256xf32> -> vector<2x256xf32>
    %57 = arith.truncf %53 : vector<2x64xf32> to vector<2x64xbf16>
    %c0_9 = arith.constant 0 : index
    %c0_10 = arith.constant 0 : index
    %58 = vector.load %arg5[%c0_9, %c0_10] : memref<64x256xbf16, #tpu.memory_space<vmem>>, vector<64x256xbf16>
    %cst_11 = arith.constant dense<0.000000e+00> : vector<2x256xf32>
    %59 = tpu.matmul %57, %58, %cst_11 {dimension_numbers = #tpu.dot_dimension_numbers<[1], [0], [0], [1], [0, 0, 1, 1], [], []>} : vector<2x64xbf16>, vector<64x256xbf16>, vector<2x256xf32> -> vector<2x256xf32>
    %60 = arith.addf %56, %59 : vector<2x256xf32>
    %c0_12 = arith.constant 0 : index
    %c0_13 = arith.constant 0 : index
    %61 = vector.load %arg6[%c0_12, %c0_13] : memref<1x256xf32, #tpu.memory_space<vmem>>, vector<1x256xf32>
    %62 = vector.broadcast %61 : vector<1x256xf32> to vector<2x256xf32>
    %63 = arith.addf %60, %62 : vector<2x256xf32>
    %64 = arith.truncf %63 : vector<2x256xf32> to vector<2x256xbf16>
    %c0_14 = arith.constant 0 : index
    %c0_15 = arith.constant 0 : index
    %65 = vector.load %arg7[%c0_14, %c0_15] : memref<256x128xbf16, #tpu.memory_space<vmem>>, vector<256x128xbf16>
    %cst_16 = arith.constant dense<0.000000e+00> : vector<2x128xf32>
    %66 = tpu.matmul %64, %65, %cst_16 {dimension_numbers = #tpu.dot_dimension_numbers<[1], [0], [0], [1], [0, 0, 1, 1], [], []>} : vector<2x256xbf16>, vector<256x128xbf16>, vector<2x128xf32> -> vector<2x128xf32>
    %c0_17 = arith.constant 0 : index
    %c0_18 = arith.constant 0 : index
    %67 = vector.load %arg8[%c0_17, %c0_18] : memref<1x128xf32, #tpu.memory_space<vmem>>, vector<1x128xf32>
    %68 = vector.broadcast %67 : vector<1x128xf32> to vector<2x128xf32>
    %69 = arith.addf %66, %68 : vector<2x128xf32>
    %c0_19 = arith.constant 0 : index
    %c0_20 = arith.constant 0 : index
    %70 = vector.load %arg9[%c0_19, %c0_20] : memref<2x128xf32, #tpu.memory_space<vmem>>, vector<2x128xf32>
    tpu.vector_store %arg9[%c0_19, %c0_20], %69 {strides = array<i32>} : memref<2x128xf32, #tpu.memory_space<vmem>>, vector<2x128xf32>,
    return
  }
  func.func @transform_0(%arg0: i32) -> (i32, i32) {
    %c0_i32 = arith.constant 0 : i32
    %c0_i32_0 = arith.constant 0 : i32
    return %arg0, %c0_i32 : i32, i32
  }
  func.func @transform_1(%arg0: i32) -> (i32, i32) {
    %c0_i32 = arith.constant 0 : i32
    %c0_i32_0 = arith.constant 0 : i32
    return %arg0, %c0_i32 : i32, i32
  }
  func.func @transform_2(%arg0: i32) -> (i32, i32) {
    %c0_i32 = arith.constant 0 : i32
    %c0_i32_0 = arith.constant 0 : i32
    %c0_i32_1 = arith.constant 0 : i32
    return %c0_i32, %c0_i32_0 : i32, i32
  }
  func.func @transform_3(%arg0: i32) -> (i32, i32) {
    %c0_i32 = arith.constant 0 : i32
    %c0_i32_0 = arith.constant 0 : i32
    %c0_i32_1 = arith.constant 0 : i32
    return %c0_i32, %c0_i32_0 : i32, i32
  }
  func.func @transform_4(%arg0: i32) -> (i32, i32) {
    %c0_i32 = arith.constant 0 : i32
    %c0_i32_0 = arith.constant 0 : i32
    %c0_i32_1 = arith.constant 0 : i32
    return %c0_i32, %c0_i32_0 : i32, i32
  }
  func.func @transform_5(%arg0: i32) -> (i32, i32) {
    %c0_i32 = arith.constant 0 : i32
    %c0_i32_0 = arith.constant 0 : i32
    %c0_i32_1 = arith.constant 0 : i32
    return %c0_i32, %c0_i32_0 : i32, i32
  }
  func.func @transform_6(%arg0: i32) -> (i32, i32) {
    %c0_i32 = arith.constant 0 : i32
    %c0_i32_0 = arith.constant 0 : i32
    %c0_i32_1 = arith.constant 0 : i32
    return %c0_i32, %c0_i32_0 : i32, i32
  }
  func.func @transform_7(%arg0: i32) -> (i32, i32) {
    %c0_i32 = arith.constant 0 : i32
    %c0_i32_0 = arith.constant 0 : i32
    %c0_i32_1 = arith.constant 0 : i32
    return %c0_i32, %c0_i32_0 : i32, i32
  }
  func.func @transform_8(%arg0: i32) -> (i32, i32) {
    %c0_i32 = arith.constant 0 : i32
    %c0_i32_0 = arith.constant 0 : i32
    return %arg0, %c0_i32 : i32, i32
  }
}

</mosaic_0001>

<llo_original>
// kernel: tpu_custom_call.1
$region0: #{tpu_custom_call.1}
  #allocation0 [shape = 'u32[]', space=smem, size = 0x4, offset = 0x4, fixed_abs, tag = 'smem constant byte address 0x4 - core index']
  #allocation1 [shape = 'u32[144,128]{1,0:T(1,128)}', space=vmem, size = 0x12000, scoped, tag = 'internal scratch']
  %s0 = inlined_call_operand.hbm [shape: s32[2,8], index: 0, kind: input, shape index: {}]
  %s1 = inlined_call_operand.vmem [shape: bf16[2,128], index: 1, kind: input, shape index: {}]
  %s2 = inlined_call_operand.hbm [shape: bf16[13,64], index: 2, kind: input, shape index: {}]
  %s3 = inlined_call_operand.hbm [shape: bf16[128,256], index: 3, kind: input, shape index: {}]
  %s4 = inlined_call_operand.hbm [shape: bf16[64,256], index: 4, kind: input, shape index: {}]
  %s5 = inlined_call_operand.vmem [shape: f32[1,256], index: 5, kind: input, shape index: {}]
  %s6 = inlined_call_operand.hbm [shape: bf16[256,128], index: 6, kind: input, shape index: {}]
  %s7 = inlined_call_operand.vmem [shape: f32[1,128], index: 7, kind: input, shape index: {}]
  %s8 = inlined_call_operand.hbm [shape: f32[2,128], index: 8, kind: output, shape index: {}]
  %s9 = sld [smem:[#allocation0]]
  $region62: #{tpu_custom_call.1} parent=0
    _
  %s11 = ssub.s32 1, %s9
  %s12 = scalar_select 0, %s11, %s9
  $region1: #{tpu_custom_call.1} parent=0
    #allocation2 [shape = 'u8[1024]{0}', space=vmem, size = 0x400, scoped, tag = 'input window, operand 0, single buffered']
    #allocation3 [shape = 's32[1]{0}', space=sflag, size = 0x4, scoped, tag = 'scoped memory for tpu_custom_call.1']
    #allocation4 [shape = 's32[1]{0}', space=sflag, size = 0x4, scoped, tag = 'scoped memory for tpu_custom_call.1']
    #allocation5 [shape = 'u8[4096]{0}', space=vmem, size = 0x1000, scoped, tag = 'input window, operand 2, single buffered']
    #allocation6 [shape = 's32[1]{0}', space=sflag, size = 0x4, scoped, tag = 'scoped memory for tpu_custom_call.1']
    #allocation7 [shape = 'u8[65536]{0}', space=vmem, size = 0x10000, scoped, tag = 'input window, operand 3, single buffered']
    #allocation8 [shape = 'u8[32768]{0}', space=vmem, size = 0x8000, scoped, tag = 'input window, operand 4, single buffered']
    #allocation9 [shape = 's32[1]{0}', space=sflag, size = 0x4, scoped, tag = 'scoped memory for tpu_custom_call.1']
    #allocation10 [shape = 'u8[65536]{0}', space=vmem, size = 0x10000, scoped, tag = 'input window, operand 6, single buffered']
    #allocation11 [shape = 'u8[1024]{0}', space=vmem, size = 0x400, scoped, tag = 'output window, operand 0, single buffered']
    %13 = vsyncpa [#allocation3], 0
    %14 = vsyncpa [#allocation6], 0
    %15 = vsyncpa [#allocation9], 0
    %16 = vsyncpa [#allocation4], 0
    // Predicated region
    $region2: #{tpu_custom_call.1} parent=1 // pred_check
      _
    $region3: #{tpu_custom_call.1} parent=1 // pred_check_branch
      %18 = sbr.rel (0) target = $region5
    $region4: #{tpu_custom_call.1} parent=1 // pred_region
      %s20 = ssub.s32 32, 32
      %21 = vsyncadd [#allocation3], %s20
      %s23 = sshll.u32 [#allocation2], 4
      %s24 = int_to_ptr.vmem [resolvable:$true] %s23
      %26 = dma.hbm_to_vmem [thread:$0]  %s0, 32, %s24, [#allocation3]
    $region5: #{tpu_custom_call.1} parent=1 // pred_fallthru
      _
    // Predicated region
    $region6: #{tpu_custom_call.1} parent=1 // pred_check
      _
    $region7: #{tpu_custom_call.1} parent=1 // pred_check_branch
      %28 = sbr.rel (0) target = $region9
    $region8: #{tpu_custom_call.1} parent=1 // pred_region
      _
    $region9: #{tpu_custom_call.1} parent=1 // pred_fallthru
      _
    // Predicated region
    $region10: #{tpu_custom_call.1} parent=1 // pred_check
      _
    $region11: #{tpu_custom_call.1} parent=1 // pred_check_branch
      %30 = sbr.rel (0) target = $region13
    $region12: #{tpu_custom_call.1} parent=1 // pred_region
      %s32 = ssub.s32 128, 128
      %33 = vsyncadd [#allocation6], %s32
      %s34 = sshll.u32 [#allocation5], 4
      %s35 = int_to_ptr.vmem [resolvable:$true] %s34
      %40 = dma.hbm_to_vmem [thread:$0]  %s2, 128, %s35, [#allocation6], 64, 64, 4
    $region13: #{tpu_custom_call.1} parent=1 // pred_fallthru
      _
    // Predicated region
    $region14: #{tpu_custom_call.1} parent=1 // pred_check
      _
    $region15: #{tpu_custom_call.1} parent=1 // pred_check_branch
      %42 = sbr.rel (0) target = $region17
    $region16: #{tpu_custom_call.1} parent=1 // pred_region
      %s44 = ssub.s32 2048, 2048
      %45 = vsyncadd [#allocation6], %s44
      %s46 = sshll.u32 [#allocation7], 4
      %s47 = int_to_ptr.vmem [resolvable:$true] %s46
      %52 = dma.hbm_to_vmem [thread:$0]  %s3, 2048, %s47, [#allocation6], 128, 128, 8
    $region17: #{tpu_custom_call.1} parent=1 // pred_fallthru
      _
    // Predicated region
    $region18: #{tpu_custom_call.1} parent=1 // pred_check
      _
    $region19: #{tpu_custom_call.1} parent=1 // pred_check_branch
      %54 = sbr.rel (0) target = $region21
    $region20: #{tpu_custom_call.1} parent=1 // pred_region
      %s56 = ssub.s32 1024, 1024
      %57 = vsyncadd [#allocation9], %s56
      %s58 = sshll.u32 [#allocation8], 4
      %s59 = int_to_ptr.vmem [resolvable:$true] %s58
      %64 = dma.hbm_to_vmem [thread:$0]  %s4, 1024, %s59, [#allocation9], 128, 128, 8
    $region21: #{tpu_custom_call.1} parent=1 // pred_fallthru
      _
    // Predicated region
    $region22: #{tpu_custom_call.1} parent=1 // pred_check
      _
    $region23: #{tpu_custom_call.1} parent=1 // pred_check_branch
      %66 = sbr.rel (0) target = $region25
    $region24: #{tpu_custom_call.1} parent=1 // pred_region
      _
    $region25: #{tpu_custom_call.1} parent=1 // pred_fallthru
      _
    // Predicated region
    $region26: #{tpu_custom_call.1} parent=1 // pred_check
      _
    $region27: #{tpu_custom_call.1} parent=1 // pred_check_branch
      %68 = sbr.rel (0) target = $region29
    $region28: #{tpu_custom_call.1} parent=1 // pred_region
      %s70 = ssub.s32 2048, 2048
      %71 = vsyncadd [#allocation9], %s70
      %s72 = sshll.u32 [#allocation10], 4
      %s73 = int_to_ptr.vmem [resolvable:$true] %s72
      %78 = dma.hbm_to_vmem [thread:$0]  %s6, 2048, %s73, [#allocation9], 64, 64, 4
    $region29: #{tpu_custom_call.1} parent=1 // pred_fallthru
      _
    // Predicated region
    $region30: #{tpu_custom_call.1} parent=1 // pred_check
      _
    $region31: #{tpu_custom_call.1} parent=1 // pred_check_branch
      %80 = sbr.rel (0) target = $region33
    $region32: #{tpu_custom_call.1} parent=1 // pred_region
      _
    $region33: #{tpu_custom_call.1} parent=1 // pred_fallthru
      _
    // Predicated region
    $region34: #{tpu_custom_call.1} parent=1 // pred_check
      _
    $region35: #{tpu_custom_call.1} parent=1 // pred_check_branch
      %82 = sbr.rel (0) target = $region37
    $region36: #{tpu_custom_call.1} parent=1 // pred_region
      %83 = dma.done [#allocation3], 32
    $region37: #{tpu_custom_call.1} parent=1 // pred_fallthru
      _
    // Predicated region
    $region38: #{tpu_custom_call.1} parent=1 // pred_check
      _
    $region39: #{tpu_custom_call.1} parent=1 // pred_check_branch
      %85 = sbr.rel (0) target = $region41
    $region40: #{tpu_custom_call.1} parent=1 // pred_region
      %86 = dma.done [#allocation6], 128
    $region41: #{tpu_custom_call.1} parent=1 // pred_fallthru
      _
    // Predicated region
    $region42: #{tpu_custom_call.1} parent=1 // pred_check
      _
    $region43: #{tpu_custom_call.1} parent=1 // pred_check_branch
      %88 = sbr.rel (0) target = $region45
    $region44: #{tpu_custom_call.1} parent=1 // pred_region
      %89 = dma.done [#allocation6], 2048
    $region45: #{tpu_custom_call.1} parent=1 // pred_fallthru
      _
    // Predicated region
    $region46: #{tpu_custom_call.1} parent=1 // pred_check
      _
    $region47: #{tpu_custom_call.1} parent=1 // pred_check_branch
      %91 = sbr.rel (0) target = $region49
    $region48: #{tpu_custom_call.1} parent=1 // pred_region
      %92 = dma.done [#allocation9], 1024
    $region49: #{tpu_custom_call.1} parent=1 // pred_fallthru
      _
    // Predicated region
    $region50: #{tpu_custom_call.1} parent=1 // pred_check
      _
    $region51: #{tpu_custom_call.1} parent=1 // pred_check_branch
      %94 = sbr.rel (0) target = $region53
    $region52: #{tpu_custom_call.1} parent=1 // pred_region
      %95 = dma.done [#allocation9], 2048
    $region53: #{tpu_custom_call.1} parent=1 // pred_fallthru
      _
    %v97 = vld [vmem:[#allocation2] sm:$0x3]
    %v98 = vlaneseq
    %v99 = vand.u32 %v98, 127
    %100 = vset.pattern.permute.xlu0 0
    %101 = vperm.xlu0 %100, %v97
    %v102 = vpop.permute.xlu0 %101
    %vm103 = vcmp.eq.s32.totalorder %v102, %v99
    %v104 = vsel %vm103, 1, 0
    %v105 = vcvt.s32.f32 %v104
    %v106 = vadd.f32 %v105, 0.0
    %107 = vset.pattern.permute.xlu0 1
    %108 = vperm.xlu0 %107, %v97
    %v109 = vpop.permute.xlu0 %108
    %vm110 = vcmp.eq.s32.totalorder %v109, %v99
    %v111 = vsel %vm110, 1, 0
    %v112 = vcvt.s32.f32 %v111
    %v113 = vadd.f32 %v106, %v112
    %114 = vset.pattern.permute.xlu0 2
    %115 = vperm.xlu0 %114, %v97
    %v116 = vpop.permute.xlu0 %115
    %vm117 = vcmp.eq.s32.totalorder %v116, %v99
    %v118 = vsel %vm117, 1, 0
    %v119 = vcvt.s32.f32 %v118
    %v120 = vadd.f32 %v113, %v119
    %121 = vset.pattern.permute.xlu0 3
    %122 = vperm.xlu0 %121, %v97
    %v123 = vpop.permute.xlu0 %122
    %vm124 = vcmp.eq.s32.totalorder %v123, %v99
    %v125 = vsel %vm124, 1, 0
    %v126 = vcvt.s32.f32 %v125
    %v127 = vadd.f32 %v120, %v126
    %128 = vset.pattern.permute.xlu0 4
    %129 = vperm.xlu0 %128, %v97
    %v130 = vpop.permute.xlu0 %129
    %vm131 = vcmp.eq.s32.totalorder %v130, %v99
    %v132 = vsel %vm131, 1, 0
    %v133 = vcvt.s32.f32 %v132
    %v134 = vadd.f32 %v127, %v133
    %135 = vset.pattern.permute.xlu0 5
    %136 = vperm.xlu0 %135, %v97
    %v137 = vpop.permute.xlu0 %136
    %vm138 = vcmp.eq.s32.totalorder %v137, %v99
    %v139 = vsel %vm138, 1, 0
    %v140 = vcvt.s32.f32 %v139
    %v141 = vadd.f32 %v134, %v140
    %142 = vset.pattern.permute.xlu0 6
    %143 = vperm.xlu0 %142, %v97
    %v144 = vpop.permute.xlu0 %143
    %vm145 = vcmp.eq.s32.totalorder %v144, %v99
    %v146 = vsel %vm145, 1, 0
    %v147 = vcvt.s32.f32 %v146
    %v148 = vadd.f32 %v141, %v147
    %149 = vset.pattern.permute.xlu0 7
    %150 = vperm.xlu0 %149, %v97
    %v151 = vpop.permute.xlu0 %150
    %vm152 = vcmp.eq.s32.totalorder %v151, %v99
    %v153 = vsel %vm152, 1, 0
    %v154 = vcvt.s32.f32 %v153
    %v155 = vadd.f32 %v148, %v154
    %v156 = vpack.c.bf16 %v155, %v155
    %v157 = vld [vmem:[#allocation5] sm:$0xf]
    %v158 = vld [vmem:[#allocation5 + $0x4] sm:$0x7]
    %v161 = vunpack.c.l.b16 %v157
    %v162 = vunpack.c.l.b16 %v158
    %v163 = vpack.c.b16 %v162, %v161
    %vm164 = vcmask 105472
    %v166 = vsel %vm164, %v156, 0
    %vm168 = vcmask 1045504
    %vm169 = vcmask 1046528
    %v170 = vsel %vm168, 4294967295, 65535
    %v171 = vsel %vm169, %v170, 0
    %v173 = vand.u32 %v163, %v171
    %175 = vmatprep.subr.bf16.mxu0 0
    %176 = vmatpush1.bf16.msra.mxu0 %v173
    %177 = vmatprep.subr.bf16.mxu0 0
    %178 = vmatpush1.bf16.msra.mxu0 0
    %179 = vmatprep.subr.bf16.mxu0 0
    %180 = vmatpush1.bf16.msra.mxu0 0
    %181 = vmatprep.subr.bf16.mxu0 0
    %182 = vmatpush1.bf16.msra.mxu0 0
    %183 = vmatprep.subr.bf16.mxu0 0
    %184 = vmatpush1.bf16.msra.mxu0 0
    %185 = vmatprep.subr.bf16.mxu0 0
    %186 = vmatpush1.bf16.msra.mxu0 0
    %187 = vmatprep.subr.bf16.mxu0 0
    %188 = vmatpush1.bf16.msra.mxu0 0
    %189 = vmatprep.subr.bf16.mxu0 0
    %190 = vmatpush1.bf16.msra.mxu0 0
    %191 = vmatprep.subr.bf16.mxu0 0
    %192 = vmatpush1.bf16.msra.mxu0 0
    %193 = vmatprep.subr.bf16.mxu0 0
    %194 = vmatpush1.bf16.msra.mxu0 0
    %195 = vmatprep.subr.bf16.mxu0 0
    %196 = vmatpush1.bf16.msra.mxu0 0
    %197 = vmatprep.subr.bf16.mxu0 0
    %198 = vmatpush1.bf16.msra.mxu0 0
    %199 = vmatprep.subr.bf16.mxu0 0
    %200 = vmatpush1.bf16.msra.mxu0 0
    %201 = vmatprep.subr.bf16.mxu0 0
    %202 = vmatpush1.bf16.msra.mxu0 0
    %203 = vmatprep.subr.bf16.mxu0 0
    %204 = vmatpush1.bf16.msra.mxu0 0
    %205 = vmatprep.subr.bf16.mxu0 0
    %206 = vmatpush1.bf16.msra.mxu0 0
    %207 = vmatprep.mubr.bf16.mxu0 0
    %208 = vmatmul.mubr.bf16.gmra.mrb[0].mxu0 %v166
    %v209 = vpop.f32.mrb[0].mxu0
    %v210 = vadd.f32 0.0, %v209
    %v211 = vpop.f32.mrb[0].mxu0
    %v212 = vpop.f32.mrb[0].mxu0
    %v213 = vpop.f32.mrb[0].mxu0
    %214 = vdwg.mxu0
    %v215 = vld [vmem:[%s1] sm:$0x1]
    %v216 = vld [vmem:[#allocation7] sm:$0xff]
    %v217 = vld [vmem:[#allocation7 + $0x8] sm:$0xff]
    %v218 = vld [vmem:[#allocation7 + $0x10] sm:$0xff]
    %v219 = vld [vmem:[#allocation7 + $0x18] sm:$0xff]
    %v220 = vld [vmem:[#allocation7 + $0x20] sm:$0xff]
    %v221 = vld [vmem:[#allocation7 + $0x28] sm:$0xff]
    %v222 = vld [vmem:[#allocation7 + $0x30] sm:$0xff]
    %v223 = vld [vmem:[#allocation7 + $0x38] sm:$0xff]
    %v224 = vld [vmem:[#allocation7 + $0x40] sm:$0xff]
    %v225 = vld [vmem:[#allocation7 + $0x48] sm:$0xff]
    %v226 = vld [vmem:[#allocation7 + $0x50] sm:$0xff]
    %v227 = vld [vmem:[#allocation7 + $0x58] sm:$0xff]
    %v228 = vld [vmem:[#allocation7 + $0x60] sm:$0xff]
    %v229 = vld [vmem:[#allocation7 + $0x68] sm:$0xff]
    %v230 = vld [vmem:[#allocation7 + $0x70] sm:$0xff]
    %v231 = vld [vmem:[#allocation7 + $0x78] sm:$0xff]
    %v232 = vpack.c.bf16 %v210, %v210
    %v233 = vld [vmem:[#allocation8] sm:$0xff]
    %v234 = vld [vmem:[#allocation8 + $0x8] sm:$0xff]
    %v235 = vld [vmem:[#allocation8 + $0x10] sm:$0xff]
    %v236 = vld [vmem:[#allocation8 + $0x18] sm:$0xff]
    %v237 = vld [vmem:[#allocation8 + $0x20] sm:$0xff]
    %v238 = vld [vmem:[#allocation8 + $0x28] sm:$0xff]
    %v239 = vld [vmem:[#allocation8 + $0x30] sm:$0xff]
    %v240 = vld [vmem:[#allocation8 + $0x38] sm:$0xff]
    %v249 = vunpack.c.l.b16 %v233
    %v250 = vunpack.c.h.b16 %v233
    %v251 = vunpack.c.l.b16 %v234
    %v252 = vunpack.c.h.b16 %v234
    %v253 = vunpack.c.l.b16 %v235
    %v254 = vunpack.c.h.b16 %v235
    %v255 = vunpack.c.l.b16 %v236
    %v256 = vunpack.c.h.b16 %v236
    %v257 = vunpack.c.l.b16 %v237
    %v258 = vunpack.c.h.b16 %v237
    %v259 = vunpack.c.l.b16 %v238
    %v260 = vunpack.c.h.b16 %v238
    %v261 = vunpack.c.l.b16 %v239
    %v262 = vunpack.c.h.b16 %v239
    %v263 = vunpack.c.l.b16 %v240
    %v264 = vunpack.c.h.b16 %v240
    %v265 = vpack.c.b16 %v251, %v249
    %v266 = vpack.c.b16 %v252, %v250
    %v267 = vpack.c.b16 %v255, %v253
    %v268 = vpack.c.b16 %v256, %v254
    %v269 = vpack.c.b16 %v259, %v257
    %v270 = vpack.c.b16 %v260, %v258
    %v271 = vpack.c.b16 %v263, %v261
    %v272 = vpack.c.b16 %v264, %v262
    %vm281 = vcmask 523264
    %v283 = vsel %vm281, %v232, 0
    %285 = vmatprep.subr.bf16.mxu0 %v266
    %286 = vmatpush1.bf16.msra.mxu0 %v265
    %287 = vmatprep.subr.bf16.mxu0 %v268
    %288 = vmatpush1.bf16.msra.mxu0 %v267
    %289 = vmatprep.subr.bf16.mxu0 %v270
    %290 = vmatpush1.bf16.msra.mxu0 %v269
    %291 = vmatprep.subr.bf16.mxu0 %v272
    %292 = vmatpush1.bf16.msra.mxu0 %v271
    %293 = vmatprep.subr.bf16.mxu0 0
    %294 = vmatpush1.bf16.msra.mxu0 0
    %295 = vmatprep.subr.bf16.mxu0 0
    %296 = vmatpush1.bf16.msra.mxu0 0
    %297 = vmatprep.subr.bf16.mxu0 0
    %298 = vmatpush1.bf16.msra.mxu0 0
    %299 = vmatprep.subr.bf16.mxu0 0
    %300 = vmatpush1.bf16.msra.mxu0 0
    %301 = vmatprep.subr.bf16.mxu0 0
    %302 = vmatpush1.bf16.msra.mxu0 0
    %303 = vmatprep.subr.bf16.mxu0 0
    %304 = vmatpush1.bf16.msra.mxu0 0
    %305 = vmatprep.subr.bf16.mxu0 0
    %306 = vmatpush1.bf16.msra.mxu0 0
    %307 = vmatprep.subr.bf16.mxu0 0
    %308 = vmatpush1.bf16.msra.mxu0 0
    %309 = vmatprep.subr.bf16.mxu0 0
    %310 = vmatpush1.bf16.msra.mxu0 0
    %311 = vmatprep.subr.bf16.mxu0 0
    %312 = vmatpush1.bf16.msra.mxu0 0
    %313 = vmatprep.subr.bf16.mxu0 0
    %314 = vmatpush1.bf16.msra.mxu0 0
    %315 = vmatprep.subr.bf16.mxu0 0
    %316 = vmatpush1.bf16.msra.mxu0 0
    %317 = vmatprep.mubr.bf16.mxu0 0
    %318 = vmatmul.mubr.bf16.gmra.mrb[0].mxu0 %v283
    %v319 = vpop.f32.mrb[0].mxu0
    %v320 = vadd.f32 0.0, %v319
    %v321 = vpop.f32.mrb[0].mxu0
    %v322 = vadd.f32 0.0, %v321
    %v323 = vpop.f32.mrb[0].mxu0
    %v324 = vpop.f32.mrb[0].mxu0
    %325 = vdwg.mxu0
    %v342 = vunpack.c.l.b16 %v216
    %v343 = vunpack.c.h.b16 %v216
    %v344 = vunpack.c.l.b16 %v217
    %v345 = vunpack.c.h.b16 %v217
    %v346 = vunpack.c.l.b16 %v218
    %v347 = vunpack.c.h.b16 %v218
    %v348 = vunpack.c.l.b16 %v219
    %v349 = vunpack.c.h.b16 %v219
    %v350 = vunpack.c.l.b16 %v220
    %v351 = vunpack.c.h.b16 %v220
    %v352 = vunpack.c.l.b16 %v221
    %v353 = vunpack.c.h.b16 %v221
    %v354 = vunpack.c.l.b16 %v222
    %v355 = vunpack.c.h.b16 %v222
    %v356 = vunpack.c.l.b16 %v223
    %v357 = vunpack.c.h.b16 %v223
    %v358 = vunpack.c.l.b16 %v224
    %v359 = vunpack.c.h.b16 %v224
    %v360 = vunpack.c.l.b16 %v225
    %v361 = vunpack.c.h.b16 %v225
    %v362 = vunpack.c.l.b16 %v226
    %v363 = vunpack.c.h.b16 %v226
    %v364 = vunpack.c.l.b16 %v227
    %v365 = vunpack.c.h.b16 %v227
    %v366 = vunpack.c.l.b16 %v228
    %v367 = vunpack.c.h.b16 %v228
    %v368 = vunpack.c.l.b16 %v229
    %v369 = vunpack.c.h.b16 %v229
    %v370 = vunpack.c.l.b16 %v230
    %v371 = vunpack.c.h.b16 %v230
    %v372 = vunpack.c.l.b16 %v231
    %v373 = vunpack.c.h.b16 %v231
    %v374 = vpack.c.b16 %v344, %v342
    %v375 = vpack.c.b16 %v345, %v343
    %v376 = vpack.c.b16 %v348, %v346
    %v377 = vpack.c.b16 %v349, %v347
    %v378 = vpack.c.b16 %v352, %v350
    %v379 = vpack.c.b16 %v353, %v351
    %v380 = vpack.c.b16 %v356, %v354
    %v381 = vpack.c.b16 %v357, %v355
    %v382 = vpack.c.b16 %v360, %v358
    %v383 = vpack.c.b16 %v361, %v359
    %v384 = vpack.c.b16 %v364, %v362
    %v385 = vpack.c.b16 %v365, %v363
    %v386 = vpack.c.b16 %v368, %v366
    %v387 = vpack.c.b16 %v369, %v367
    %v388 = vpack.c.b16 %v372, %v370
    %v389 = vpack.c.b16 %v373, %v371
    %406 = vmatprep.subr.bf16.mxu0 %v375
    %407 = vmatpush1.bf16.msra.mxu0 %v374
    %408 = vmatprep.subr.bf16.mxu0 %v377
    %409 = vmatpush1.bf16.msra.mxu0 %v376
    %410 = vmatprep.subr.bf16.mxu0 %v379
    %411 = vmatpush1.bf16.msra.mxu0 %v378
    %412 = vmatprep.subr.bf16.mxu0 %v381
    %413 = vmatpush1.bf16.msra.mxu0 %v380
    %414 = vmatprep.subr.bf16.mxu0 %v383
    %415 = vmatpush1.bf16.msra.mxu0 %v382
    %416 = vmatprep.subr.bf16.mxu0 %v385
    %417 = vmatpush1.bf16.msra.mxu0 %v384
    %418 = vmatprep.subr.bf16.mxu0 %v387
    %419 = vmatpush1.bf16.msra.mxu0 %v386
    %420 = vmatprep.subr.bf16.mxu0 %v389
    %421 = vmatpush1.bf16.msra.mxu0 %v388
    %422 = vmatprep.subr.bf16.mxu0 0
    %423 = vmatpush1.bf16.msra.mxu0 0
    %424 = vmatprep.subr.bf16.mxu0 0
    %425 = vmatpush1.bf16.msra.mxu0 0
    %426 = vmatprep.subr.bf16.mxu0 0
    %427 = vmatpush1.bf16.msra.mxu0 0
    %428 = vmatprep.subr.bf16.mxu0 0
    %429 = vmatpush1.bf16.msra.mxu0 0
    %430 = vmatprep.subr.bf16.mxu0 0
    %431 = vmatpush1.bf16.msra.mxu0 0
    %432 = vmatprep.subr.bf16.mxu0 0
    %433 = vmatpush1.bf16.msra.mxu0 0
    %434 = vmatprep.subr.bf16.mxu0 0
    %435 = vmatpush1.bf16.msra.mxu0 0
    %436 = vmatprep.subr.bf16.mxu0 0
    %437 = vmatpush1.bf16.msra.mxu0 0
    %438 = vmatprep.mubr.bf16.mxu0 0
    %439 = vmatmul.mubr.bf16.gmra.mrb[0].mxu0 %v215
    %v440 = vpop.f32.mrb[0].mxu0
    %v441 = vadd.f32 %v320, %v440
    %v442 = vpop.f32.mrb[0].mxu0
    %v443 = vadd.f32 %v322, %v442
    %v444 = vpop.f32.mrb[0].mxu0
    %v445 = vpop.f32.mrb[0].mxu0
    %446 = vdwg.mxu0
    %v447 = vld [vmem:[%s5] sm:$0x3]
    %v449 = vlaneseq
    %v450 = vshrl.u32 %v449, 7
    %v451 = vsub.s32 0, %v450
    %v452 = vrot.slane %v447, %v451
    %v453 = vlaneseq
    %v454 = vshrl.u32 %v453, 7
    %v455 = vsub.s32 1, %v454
    %v456 = vrot.slane %v447, %v455
    %v459 = vadd.f32 %v441, %v452
    %v460 = vadd.f32 %v443, %v456
    %v461 = vpack.c.bf16 %v459, %v459
    %v462 = vpack.c.bf16 %v460, %v460
    %v463 = vld [vmem:[#allocation10] sm:$0xf]
    %v464 = vld [vmem:[#allocation10 + $0x4] sm:$0xf]
    %v465 = vld [vmem:[#allocation10 + $0x8] sm:$0xf]
    %v466 = vld [vmem:[#allocation10 + $0xc] sm:$0xf]
    %v467 = vld [vmem:[#allocation10 + $0x10] sm:$0xf]
    %v468 = vld [vmem:[#allocation10 + $0x14] sm:$0xf]
    %v469 = vld [vmem:[#allocation10 + $0x18] sm:$0xf]
    %v470 = vld [vmem:[#allocation10 + $0x1c] sm:$0xf]
    %v471 = vld [vmem:[#allocation10 + $0x20] sm:$0xf]
    %v472 = vld [vmem:[#allocation10 + $0x24] sm:$0xf]
    %v473 = vld [vmem:[#allocation10 + $0x28] sm:$0xf]
    %v474 = vld [vmem:[#allocation10 + $0x2c] sm:$0xf]
    %v475 = vld [vmem:[#allocation10 + $0x30] sm:$0xf]
    %v476 = vld [vmem:[#allocation10 + $0x34] sm:$0xf]
    %v477 = vld [vmem:[#allocation10 + $0x38] sm:$0xf]
    %v478 = vld [vmem:[#allocation10 + $0x3c] sm:$0xf]
    %v479 = vld [vmem:[#allocation10 + $0x40] sm:$0xf]
    %v480 = vld [vmem:[#allocation10 + $0x44] sm:$0xf]
    %v481 = vld [vmem:[#allocation10 + $0x48] sm:$0xf]
    %v482 = vld [vmem:[#allocation10 + $0x4c] sm:$0xf]
    %v483 = vld [vmem:[#allocation10 + $0x50] sm:$0xf]
    %v484 = vld [vmem:[#allocation10 + $0x54] sm:$0xf]
    %v485 = vld [vmem:[#allocation10 + $0x58] sm:$0xf]
    %v486 = vld [vmem:[#allocation10 + $0x5c] sm:$0xf]
    %v487 = vld [vmem:[#allocation10 + $0x60] sm:$0xf]
    %v488 = vld [vmem:[#allocation10 + $0x64] sm:$0xf]
    %v489 = vld [vmem:[#allocation10 + $0x68] sm:$0xf]
    %v490 = vld [vmem:[#allocation10 + $0x6c] sm:$0xf]
    %v491 = vld [vmem:[#allocation10 + $0x70] sm:$0xf]
    %v492 = vld [vmem:[#allocation10 + $0x74] sm:$0xf]
    %v493 = vld [vmem:[#allocation10 + $0x78] sm:$0xf]
    %v494 = vld [vmem:[#allocation10 + $0x7c] sm:$0xf]
    %v495 = vld [vmem:[%s7] sm:$0x1]
    %v497 = vlaneseq
    %v498 = vshrl.u32 %v497, 7
    %v499 = vsub.s32 0, %v498
    %v500 = vrot.slane %v495, %v499
    %v534 = vunpack.c.l.b16 %v463
    %v535 = vunpack.c.l.b16 %v464
    %v536 = vunpack.c.l.b16 %v465
    %v537 = vunpack.c.l.b16 %v466
    %v538 = vunpack.c.l.b16 %v467
    %v539 = vunpack.c.l.b16 %v468
    %v540 = vunpack.c.l.b16 %v469
    %v541 = vunpack.c.l.b16 %v470
    %v542 = vunpack.c.l.b16 %v471
    %v543 = vunpack.c.l.b16 %v472
    %v544 = vunpack.c.l.b16 %v473
    %v545 = vunpack.c.l.b16 %v474
    %v546 = vunpack.c.l.b16 %v475
    %v547 = vunpack.c.l.b16 %v476
    %v548 = vunpack.c.l.b16 %v477
    %v549 = vunpack.c.l.b16 %v478
    %v550 = vunpack.c.l.b16 %v479
    %v551 = vunpack.c.l.b16 %v480
    %v552 = vunpack.c.l.b16 %v481
    %v553 = vunpack.c.l.b16 %v482
    %v554 = vunpack.c.l.b16 %v483
    %v555 = vunpack.c.l.b16 %v484
    %v556 = vunpack.c.l.b16 %v485
    %v557 = vunpack.c.l.b16 %v486
    %v558 = vunpack.c.l.b16 %v487
    %v559 = vunpack.c.l.b16 %v488
    %v560 = vunpack.c.l.b16 %v489
    %v561 = vunpack.c.l.b16 %v490
    %v562 = vunpack.c.l.b16 %v491
    %v563 = vunpack.c.l.b16 %v492
    %v564 = vunpack.c.l.b16 %v493
    %v565 = vunpack.c.l.b16 %v494
    %v566 = vpack.c.b16 %v535, %v534
    %v567 = vpack.c.b16 %v537, %v536
    %v568 = vpack.c.b16 %v539, %v538
    %v569 = vpack.c.b16 %v541, %v540
    %v570 = vpack.c.b16 %v543, %v542
    %v571 = vpack.c.b16 %v545, %v544
    %v572 = vpack.c.b16 %v547, %v546
    %v573 = vpack.c.b16 %v549, %v548
    %v574 = vpack.c.b16 %v551, %v550
    %v575 = vpack.c.b16 %v553, %v552
    %v576 = vpack.c.b16 %v555, %v554
    %v577 = vpack.c.b16 %v557, %v556
    %v578 = vpack.c.b16 %v559, %v558
    %v579 = vpack.c.b16 %v561, %v560
    %v580 = vpack.c.b16 %v563, %v562
    %v581 = vpack.c.b16 %v565, %v564
    %598 = vmatprep.subr.bf16.mxu0 0
    %599 = vmatpush1.bf16.msra.mxu0 %v566
    %600 = vmatprep.subr.bf16.mxu0 0
    %601 = vmatpush1.bf16.msra.mxu0 %v567
    %602 = vmatprep.subr.bf16.mxu0 0
    %603 = vmatpush1.bf16.msra.mxu0 %v568
    %604 = vmatprep.subr.bf16.mxu0 0
    %605 = vmatpush1.bf16.msra.mxu0 %v569
    %606 = vmatprep.subr.bf16.mxu0 0
    %607 = vmatpush1.bf16.msra.mxu0 %v570
    %608 = vmatprep.subr.bf16.mxu0 0
    %609 = vmatpush1.bf16.msra.mxu0 %v571
    %610 = vmatprep.subr.bf16.mxu0 0
    %611 = vmatpush1.bf16.msra.mxu0 %v572
    %612 = vmatprep.subr.bf16.mxu0 0
    %613 = vmatpush1.bf16.msra.mxu0 %v573
    %614 = vmatprep.subr.bf16.mxu0 0
    %615 = vmatpush1.bf16.msra.mxu0 %v574
    %616 = vmatprep.subr.bf16.mxu0 0
    %617 = vmatpush1.bf16.msra.mxu0 %v575
    %618 = vmatprep.subr.bf16.mxu0 0
    %619 = vmatpush1.bf16.msra.mxu0 %v576
    %620 = vmatprep.subr.bf16.mxu0 0
    %621 = vmatpush1.bf16.msra.mxu0 %v577
    %622 = vmatprep.subr.bf16.mxu0 0
    %623 = vmatpush1.bf16.msra.mxu0 %v578
    %624 = vmatprep.subr.bf16.mxu0 0
    %625 = vmatpush1.bf16.msra.mxu0 %v579
    %626 = vmatprep.subr.bf16.mxu0 0
    %627 = vmatpush1.bf16.msra.mxu0 %v580
    %628 = vmatprep.subr.bf16.mxu0 0
    %629 = vmatpush1.bf16.msra.mxu0 %v581
    %630 = vmatprep.mubr.bf16.mxu0 %v462
    %631 = vmatmul.mubr.bf16.gmra.mrb[0].mxu0 %v461
    %v632 = vpop.f32.mrb[0].mxu0
    %v633 = vadd.f32 %v500, %v632
    %v634 = vpop.f32.mrb[0].mxu0
    %v635 = vpop.f32.mrb[0].mxu0
    %v636 = vpop.f32.mrb[0].mxu0
    %637 = vdwg.mxu0
    %638 = vst [vmem:[#allocation11] sm:$0x3] %v633
    // Predicated region
    $region54: #{tpu_custom_call.1} parent=1 // pred_check
      _
    $region55: #{tpu_custom_call.1} parent=1 // pred_check_branch
      %640 = sbr.rel (0) target = $region57
    $region56: #{tpu_custom_call.1} parent=1 // pred_region
      %s642 = ssub.s32 32, 32
      %643 = vsyncadd [#allocation4], %s642
      %s645 = sshll.u32 [#allocation11], 4
      %s646 = int_to_ptr.vmem [resolvable:$true] %s645
      %648 = dma.vmem_to_hbm [thread:$0]  %s646, 32, %s8, [#allocation4]
    $region57: #{tpu_custom_call.1} parent=1 // pred_fallthru
      _
    // Predicated region
    $region58: #{tpu_custom_call.1} parent=1 // pred_check
      _
    $region59: #{tpu_custom_call.1} parent=1 // pred_check_branch
      %650 = sbr.rel (0) target = $region61
    $region60: #{tpu_custom_call.1} parent=1 // pred_region
      %651 = dma.done [#allocation4], 32
    $region61: #{tpu_custom_call.1} parent=1 // pred_fallthru
      _
    %652 = vsyncpa [#allocation3], 1
    %653 = vsyncpa [#allocation6], 1
    %654 = vsyncpa [#allocation9], 1
    %655 = vsyncpa [#allocation4], 1

</llo_original>
